<compile_context>
chip_gen: v7x
topology: tpu7x:2x2x1
jax: 0.10.0
libtpu: 0.0.40
codegen_flags: <defaults>
</compile_context>

<pallas_src>
import functools

import numpy as np
import jax
import jax.numpy as jnp
from jax import lax
from jax.experimental import pallas as pl
from jax.experimental.pallas import tpu as pltpu


def _round_up(x, m):
    return ((x + m - 1) // m) * m


# ----------------------------- Pallas kernel ------------------------------ #
def _embedding_gather_kernel(ids_ref, tab_ref, out_ref, acc_ref, *, n_vocab):
    # ids_ref: (1, T) int32    lane-dense token-id block for this token tile
    # tab_ref: (Vc, n_d) bf16  chunk of the stacked [hi; mid; lo] split table
    # out_ref: (T, n_d)        gathered embedding rows
    # acc_ref: (T, n_d) f32    accumulator across vocab chunks
    k = pl.program_id(1)

    @pl.when(k == 0)
    def _():
        acc_ref[...] = jnp.zeros_like(acc_ref)

    T = out_ref.shape[0]
    v_chunk = tab_ref.shape[0]

    # (1, T) lane-dense ids -> (T, 1) column; one relayout on the idle XLU.
    ids_col = ids_ref[...].reshape(T, 1)

    # Global row indices (in the stacked table) covered by this chunk.
    row_g = k * v_chunk + lax.broadcasted_iota(jnp.int32, (T, v_chunk), 1)

    # Tri-hot: token id hits rows id, id+n_vocab, id+2*n_vocab of the stacked
    # [hi; mid; lo] table, so one DEFAULT-precision bf16 matmul with f32
    # accumulation reconstructs the exact f32 value (hi + mid + lo).
    # Out-of-range ids hit nothing -> zero row (documented divergence).
    hit = ((row_g == ids_col)
           | (row_g == ids_col + n_vocab)
           | (row_g == ids_col + 2 * n_vocab))
    one_hot = hit.astype(tab_ref.dtype)                      # (T, Vc) bf16

    acc_ref[...] += lax.dot_general(
        one_hot, tab_ref[...],
        dimension_numbers=(((1,), (0,)), ((), ())),
        preferred_element_type=jnp.float32)

    @pl.when(k == pl.num_programs(1) - 1)
    def _():
        out_ref[...] = acc_ref[...].astype(out_ref.dtype)


# ------------------------------ host wrapper ------------------------------ #
def embedding_lookup(ids, emb_weight, *, token_tile=256,
                     vocab_chunk_rows=512,
                     resident_table_bytes=12 * 2**20):
    """Pallas equivalent of nn.Embedding(ids) -> (*ids.shape, n_d)."""
    n_V, n_d = emb_weight.shape
    out_dtype = emb_weight.dtype
    itemsize = np.dtype(out_dtype).itemsize

    # --- exact 3-way bf16 split of the f32 table: hi + mid + lo == weight --- #
    w = emb_weight.astype(jnp.float32)
    hi = w.astype(jnp.bfloat16)
    r1 = w - hi.astype(jnp.float32)
    mid = r1.astype(jnp.bfloat16)
    lo = (r1 - mid.astype(jnp.float32)).astype(jnp.bfloat16)
    stacked = jnp.concatenate([hi, mid, lo], axis=0)          # (3*n_V, n_d) bf16
    stacked_rows = 3 * n_V

    # --- vocab chunking: VMEM-resident table when it fits, streamed otherwise #
    rows_aligned = _round_up(stacked_rows, 16)                # bf16 sublane pack
    if rows_aligned * n_d * 2 <= resident_table_bytes:
        v_chunk = rows_aligned                                # whole table, 1 chunk
    else:
        # stream in chunks; multiple of 256 keeps the v6e/v7x MXU depth full
        v_chunk = _round_up(vocab_chunk_rows, 256)
    n_vchunks = pl.cdiv(stacked_rows, v_chunk)
    v_pad_rows = n_vchunks * v_chunk
    if v_pad_rows > stacked_rows:
        stacked = jnp.pad(stacked, ((0, v_pad_rows - stacked_rows), (0, 0)))

    # --- token tiling (adaptive so tiny inputs don't pad to 256) ------------ #
    flat_ids = ids.reshape(-1).astype(jnp.int32)
    n_tok = flat_ids.shape[0]
    token_tile = max(8, min(int(token_tile), _round_up(n_tok, 8)))
    token_tile = _round_up(token_tile, 8)
    n_tiles = pl.cdiv(n_tok, token_tile)
    n_pad = n_tiles * token_tile
    # pad with id 0 (valid row); padded rows are sliced off afterwards
    ids_padded = jnp.zeros((n_pad,), jnp.int32).at[:n_tok].set(flat_ids)
    ids_tiles = ids_padded.reshape(n_tiles, token_tile)       # lane-dense blocks

    # --- specs --------------------------------------------------------------- #
    if n_vchunks == 1:
        # constant index_map -> loaded once; single-buffer it (no prefetch needed)
        table_spec = pl.BlockSpec((v_chunk, n_d), lambda i, k: (k, 0),
                                  pipeline_mode=pl.Buffered(1))
    else:
        table_spec = pl.BlockSpec((v_chunk, n_d), lambda i, k: (k, 0))

    table_bytes = v_pad_rows * n_d * 2
    table_reads = 1 if n_vchunks == 1 else n_tiles
    cost = pl.CostEstimate(
        flops=2 * n_pad * v_pad_rows * n_d,
        transcendentals=0,
        bytes_accessed=(table_bytes * table_reads      # stacked bf16 table
                        + n_pad * 4                    # ids
                        + n_pad * n_d * itemsize),     # output
    )

    block_bytes = (token_tile * 4 * 2                                  # ids x2 buf
                   + v_chunk * n_d * 2 * (1 if n_vchunks == 1 else 2)  # table
                   + token_tile * n_d * itemsize * 2                   # out x2 buf
                   + token_tile * n_d * 4)                             # f32 acc
    vmem_limit = int(min(max(4 * block_bytes, 8 * 2**20), 48 * 2**20))

    out_padded = pl.pallas_call(
        functools.partial(_embedding_gather_kernel, n_vocab=n_V),
        out_shape=jax.ShapeDtypeStruct((n_pad, n_d), out_dtype),
        grid_spec=pltpu.PrefetchScalarGridSpec(
            num_scalar_prefetch=0,
            grid=(n_tiles, n_vchunks),
            in_specs=[
                pl.BlockSpec((1, token_tile), lambda i, k: (i, 0)),  # ids tile
                table_spec,                                          # table chunk
            ],
            out_specs=pl.BlockSpec((token_tile, n_d), lambda i, k: (i, 0)),
            scratch_shapes=[pltpu.VMEM((token_tile, n_d), jnp.float32)],
        ),
        compiler_params=pltpu.CompilerParams(
            dimension_semantics=("parallel", "arbitrary"),
            vmem_limit_bytes=vmem_limit),
        cost_estimate=cost,
    )(ids_tiles, stacked)

    return out_padded[:n_tok].reshape(*ids.shape, n_d)


# ----------------------- parameter setup (== __init__) -------------------- #
def build_embedding_weight(key, n_words, n_d, normalize=True):
    """Reproduces EmbeddingLayer.__init__ parameter construction.

    - vocab = word_list + <oov> + <pad>  ->  n_V = n_words + 2
    - full weight ~ U(-0.25, 0.25)
    - first n_words rows overwritten by the "pre-trained" embedding_matrix
    - each row divided by its L2 norm (normalize=True)
    """
    k_pre, k_full = jax.random.split(key)
    embedding_matrix = jax.random.uniform(
        k_pre, (n_words, n_d), dtype=jnp.float32, minval=-0.25, maxval=0.25)

    n_V = n_words + 2  # + <oov>, <pad>
    weight = jax.random.uniform(
        k_full, (n_V, n_d), dtype=jnp.float32, minval=-0.25, maxval=0.25)
    weight = weight.at[:n_words].set(embedding_matrix)

    if normalize:
        norms = jnp.linalg.norm(weight, ord=2, axis=1, keepdims=True)
        weight = weight / norms
    return weight


# ---------------------------------- main ----------------------------------- #
if __name__ == "__main__":
    key = jax.random.PRNGKey(0)
    k_w, k_ids = jax.random.split(key)

    n_words = 62          # len(word_list)
    n_d = 128             # embedding dim (lane-friendly)
    batch, seq = 2, 8

    weight = build_embedding_weight(k_w, n_words, n_d, normalize=True)
    n_V = weight.shape[0]

    ids = jax.random.randint(k_ids, (batch, seq), 0, n_V, dtype=jnp.int32)

    out = embedding_lookup(ids, weight)
    out = jax.block_until_ready(out)

    # reference: plain JAX gather (== torch nn.Embedding forward)
    ref = jnp.take(weight, ids, axis=0)
    assert out.shape == (batch, seq, n_d)
    assert out.dtype == jnp.float32
    # hi+mid+lo bf16 split reconstructs f32 to within ~1 ulp
    np.testing.assert_allclose(np.asarray(out), np.asarray(ref),
                               rtol=1e-6, atol=1e-6)

    print("KERNEL_OK")
</pallas_src>

<mosaic_0001>
module attributes {stable_mosaic.version = 11 : i64} {
  func.func @_embedding_gather_kernel(%arg0: i32, %arg1: i32, %arg2: memref<1x16xi32, #tpu.memory_space<vmem>>, %arg3: memref<192x128xbf16, #tpu.memory_space<vmem>>, %arg4: memref<16x128xf32, #tpu.memory_space<vmem>>, %arg5: memref<16x128xf32, #tpu.memory_space<vmem>>) attributes {dimension_semantics = [#tpu.dimension_semantics<parallel>, #tpu.dimension_semantics<arbitrary>], iteration_bounds = array<i64: 1, 1>, scalar_prefetch = 0 : i64, scratch_operands = 1 : i64, tpu.core_type = #tpu.core_type<tc>, window_params = [{transform_indices = @transform_0, window_bounds = array<i64: 1, 16>}, {pipeline_mode = #tpu.pipeline_mode<synchronous>, transform_indices = @transform_1, window_bounds = array<i64: 192, 128>}, {transform_indices = @transform_2, window_bounds = array<i64: 16, 128>}]} {
    %c0_i32 = arith.constant 0 : i32
    %0 = arith.cmpi eq, %arg1, %c0_i32 : i32
    %1 = arith.extui %0 : i1 to i32
    %c0_i32_0 = arith.constant 0 : i32
    %2 = arith.cmpi ne, %1, %c0_i32_0 : i32
    scf.if %2 {
      %cst_10 = arith.constant 0.000000e+00 : f32
      %32 = vector.broadcast %cst_10 : f32 to vector<16x128xf32>
      %c0_11 = arith.constant 0 : index
      %c0_12 = arith.constant 0 : index
      %33 = vector.load %arg5[%c0_11, %c0_12] : memref<16x128xf32, #tpu.memory_space<vmem>>, vector<16x128xf32>
      tpu.vector_store %arg5[%c0_11, %c0_12], %32 {strides = array<i32>} : memref<16x128xf32, #tpu.memory_space<vmem>>, vector<16x128xf32>,
    } else {
    }
    %c0 = arith.constant 0 : index
    %c0_1 = arith.constant 0 : index
    %3 = vector.load %arg2[%c0, %c0_1] : memref<1x16xi32, #tpu.memory_space<vmem>>, vector<1x16xi32>
    %4 = vector.shape_cast %3 : vector<1x16xi32> to vector<16x1xi32>
    %c192_i32 = arith.constant 192 : i32
    %5 = arith.muli %arg1, %c192_i32 : i32
    %6 = tpu.iota {dimensions = array<i32: 1>} : vector<16x192xi32>
    %7 = vector.broadcast %5 : i32 to vector<16x192xi32>
    %8 = arith.addi %7, %6 : vector<16x192xi32>
    %9 = vector.broadcast %4 : vector<16x1xi32> to vector<16x192xi32>
    %10 = arith.cmpi eq, %8, %9 : vector<16x192xi32>
    %c64_i32 = arith.constant 64 : i32
    %11 = vector.broadcast %c64_i32 : i32 to vector<16x1xi32>
    %12 = arith.addi %4, %11 : vector<16x1xi32>
    %13 = vector.broadcast %12 : vector<16x1xi32> to vector<16x192xi32>
    %14 = arith.cmpi eq, %8, %13 : vector<16x192xi32>
    %15 = arith.ori %10, %14 : vector<16x192xi1>
    %c128_i32 = arith.constant 128 : i32
    %16 = vector.broadcast %c128_i32 : i32 to vector<16x1xi32>
    %17 = arith.addi %4, %16 : vector<16x1xi32>
    %18 = vector.broadcast %17 : vector<16x1xi32> to vector<16x192xi32>
    %19 = arith.cmpi eq, %8, %18 : vector<16x192xi32>
    %20 = arith.ori %15, %19 : vector<16x192xi1>
    %21 = arith.extui %20 : vector<16x192xi1> to vector<16x192xi32>
    %22 = arith.sitofp %21 : vector<16x192xi32> to vector<16x192xf32>
    %23 = arith.truncf %22 : vector<16x192xf32> to vector<16x192xbf16>
    %c0_2 = arith.constant 0 : index
    %c0_3 = arith.constant 0 : index
    %24 = vector.load %arg5[%c0_2, %c0_3] : memref<16x128xf32, #tpu.memory_space<vmem>>, vector<16x128xf32>
    %c0_4 = arith.constant 0 : index
    %c0_5 = arith.constant 0 : index
    %25 = vector.load %arg3[%c0_4, %c0_5] : memref<192x128xbf16, #tpu.memory_space<vmem>>, vector<192x128xbf16>
    %cst = arith.constant dense<0.000000e+00> : vector<16x128xf32>
    %26 = tpu.matmul %23, %25, %cst {dimension_numbers = #tpu.dot_dimension_numbers<[1], [0], [0], [1], [0, 0, 1, 1], [], []>} : vector<16x192xbf16>, vector<192x128xbf16>, vector<16x128xf32> -> vector<16x128xf32>
    %27 = arith.addf %24, %26 : vector<16x128xf32>
    %c0_6 = arith.constant 0 : index
    %c0_7 = arith.constant 0 : index
    %28 = vector.load %arg5[%c0_6, %c0_7] : memref<16x128xf32, #tpu.memory_space<vmem>>, vector<16x128xf32>
    tpu.vector_store %arg5[%c0_6, %c0_7], %27 {strides = array<i32>} : memref<16x128xf32, #tpu.memory_space<vmem>>, vector<16x128xf32>,
    %c0_i32_8 = arith.constant 0 : i32
    %29 = arith.cmpi eq, %arg1, %c0_i32_8 : i32
    %30 = arith.extui %29 : i1 to i32
    %c0_i32_9 = arith.constant 0 : i32
    %31 = arith.cmpi ne, %30, %c0_i32_9 : i32
    scf.if %31 {
      %c0_10 = arith.constant 0 : index
      %c0_11 = arith.constant 0 : index
      %32 = vector.load %arg5[%c0_10, %c0_11] : memref<16x128xf32, #tpu.memory_space<vmem>>, vector<16x128xf32>
      %c0_12 = arith.constant 0 : index
      %c0_13 = arith.constant 0 : index
      %33 = vector.load %arg4[%c0_12, %c0_13] : memref<16x128xf32, #tpu.memory_space<vmem>>, vector<16x128xf32>
      tpu.vector_store %arg4[%c0_12, %c0_13], %32 {strides = array<i32>} : memref<16x128xf32, #tpu.memory_space<vmem>>, vector<16x128xf32>,
    } else {
    }
    return
  }
  func.func @transform_0(%arg0: i32, %arg1: i32) -> (i32, i32) {
    %c0_i32 = arith.constant 0 : i32
    %c0_i32_0 = arith.constant 0 : i32
    return %arg0, %c0_i32 : i32, i32
  }
  func.func @transform_1(%arg0: i32, %arg1: i32) -> (i32, i32) {
    %c0_i32 = arith.constant 0 : i32
    %c0_i32_0 = arith.constant 0 : i32
    return %arg1, %c0_i32 : i32, i32
  }
  func.func @transform_2(%arg0: i32, %arg1: i32) -> (i32, i32) {
    %c0_i32 = arith.constant 0 : i32
    %c0_i32_0 = arith.constant 0 : i32
    return %arg0, %c0_i32 : i32, i32
  }
}

</mosaic_0001>

<llo_original>
// kernel: tpu_custom_call.1
$region0: #{tpu_custom_call.1}
  #allocation0 [shape = 'u32[]', space=smem, size = 0x4, offset = 0x4, fixed_abs, tag = 'smem constant byte address 0x4 - core index']
  #allocation1 [shape = 'u32[144,128]{1,0:T(1,128)}', space=vmem, size = 0x12000, scoped, tag = 'internal scratch']
  #allocation2 [shape = 'f32[16,128]{1,0:T(8,128)}', space=vmem, size = 0x2000, scoped, tag = 'scratch operand']
  %s0 = inlined_call_operand.hbm [shape: s32[1,16], index: 0, kind: input, shape index: {}]
  %s1 = inlined_call_operand.hbm [shape: bf16[192,128], index: 1, kind: input, shape index: {}]
  %s2 = inlined_call_operand.hbm [shape: f32[16,128], index: 2, kind: output, shape index: {}]
  %s3 = sld [smem:[#allocation0]]
  $region34: #{tpu_custom_call.1} parent=0
    _
  %s5 = ssub.s32 1, %s3
  %s6 = scalar_select 0, %s5, %s3
  $region1: #{tpu_custom_call.1} parent=0
    #allocation3 [shape = 'u8[512]{0}', space=vmem, size = 0x400, scoped, tag = 'input window, operand 0, single buffered']
    #allocation4 [shape = 's32[1]{0}', space=sflag, size = 0x4, scoped, tag = 'scoped memory for tpu_custom_call.1']
    #allocation5 [shape = 's32[1]{0}', space=sflag, size = 0x4, scoped, tag = 'scoped memory for tpu_custom_call.1']
    #allocation6 [shape = 'u8[49152]{0}', space=vmem, size = 0xc000, scoped, tag = 'input window, operand 1, single buffered']
    #allocation7 [shape = 's32[1]{0}', space=sflag, size = 0x4, scoped, tag = 'scoped memory for tpu_custom_call.1']
    #allocation8 [shape = 'u8[8192]{0}', space=vmem, size = 0x2000, scoped, tag = 'output window, operand 0, single buffered']
    %7 = vsyncpa [#allocation4], 0
    %8 = vsyncpa [#allocation7], 0
    %9 = vsyncpa [#allocation5], 0
    // Predicated region
    $region2: #{tpu_custom_call.1} parent=1 // pred_check
      _
    $region3: #{tpu_custom_call.1} parent=1 // pred_check_branch
      %11 = sbr.rel (0) target = $region5
    $region4: #{tpu_custom_call.1} parent=1 // pred_region
      %s13 = ssub.s32 16, 16
      %14 = vsyncadd [#allocation4], %s13
      %s16 = sshll.u32 [#allocation3], 4
      %s17 = int_to_ptr.vmem [resolvable:$true] %s16
      %19 = dma.hbm_to_vmem [thread:$0]  %s0, 16, %s17, [#allocation4]
    $region5: #{tpu_custom_call.1} parent=1 // pred_fallthru
      _
    // Predicated region
    $region6: #{tpu_custom_call.1} parent=1 // pred_check
      _
    $region7: #{tpu_custom_call.1} parent=1 // pred_check_branch
      %21 = sbr.rel (0) target = $region9
    $region8: #{tpu_custom_call.1} parent=1 // pred_region
      %s23 = ssub.s32 1536, 1536
      %24 = vsyncadd [#allocation7], %s23
      %s25 = sshll.u32 [#allocation6], 4
      %s26 = int_to_ptr.vmem [resolvable:$true] %s25
      %31 = dma.hbm_to_vmem [thread:$0]  %s1, 1536, %s26, [#allocation7], 64, 64, 4
    $region9: #{tpu_custom_call.1} parent=1 // pred_fallthru
      _
    // Predicated region
    $region10: #{tpu_custom_call.1} parent=1 // pred_check
      _
    $region11: #{tpu_custom_call.1} parent=1 // pred_check_branch
      %33 = sbr.rel (0) target = $region13
    $region12: #{tpu_custom_call.1} parent=1 // pred_region
      %34 = dma.done [#allocation4], 16
    $region13: #{tpu_custom_call.1} parent=1 // pred_fallthru
      _
    // Predicated region
    $region14: #{tpu_custom_call.1} parent=1 // pred_check
      _
    $region15: #{tpu_custom_call.1} parent=1 // pred_check_branch
      %36 = sbr.rel (0) target = $region17
    $region16: #{tpu_custom_call.1} parent=1 // pred_region
      %37 = dma.done [#allocation7], 1536
    $region17: #{tpu_custom_call.1} parent=1 // pred_fallthru
      _
    %p39 = scmp.eq.s32.totalorder 0, 0
    // Predicated region
    $region18: #{tpu_custom_call.1} parent=1 // pred_check
      %p40 = pneg %p39
    $region19: #{tpu_custom_call.1} parent=1 // pred_check_branch
      %42 = sbr.rel (%p40) target = $region21
    $region20: #{tpu_custom_call.1} parent=1 // pred_region
      %43 = vst [vmem:[#allocation2] sm:$0xff] 0.0
      %44 = vst [vmem:[#allocation2 + $0x8] sm:$0xff] 0.0
    $region21: #{tpu_custom_call.1} parent=1 // pred_fallthru
      _
    %v45 = vld [vmem:[#allocation3] sm:$0x1]
    %v46 = vlaneseq
    %v47 = vshrl.u32 %v46, 7
    %v48 = vsub.s32 0, %v47
    %v49 = vrot.slane %v45, %v48
    %51 = vbcast.lane.b32.xlu0 %v49, 256
    %v52 = vpop.permute.xlu0 %51
    %s54 = sor.u32 256, 8
    %55 = vbcast.lane.b32.xlu0 %v49, %s54
    %v56 = vpop.permute.xlu0 %55
    %s57 = smul.u32 0, 192
    %v58 = vlaneseq
    %v59 = vand.u32 %v58, 127
    %v60 = vadd.s32 %v59, 128
    %v61 = vstv %s57
    %v62 = vadd.s32 %v61, %v59
    %v63 = vadd.s32 %v61, %v60
    %vm64 = vcmp.eq.s32.totalorder %v62, %v52
    %vm65 = vcmp.eq.s32.totalorder %v63, %v52
    %vm66 = vcmp.eq.s32.totalorder %v62, %v56
    %vm67 = vcmp.eq.s32.totalorder %v63, %v56
    %v68 = vadd.s32 %v52, 64
    %v69 = vadd.s32 %v56, 64
    %vm70 = vcmp.eq.s32.totalorder %v62, %v68
    %vm71 = vcmp.eq.s32.totalorder %v63, %v68
    %vm72 = vcmp.eq.s32.totalorder %v62, %v69
    %vm73 = vcmp.eq.s32.totalorder %v63, %v69
    %vm74 = vmor %vm64, %vm70
    %vm75 = vmor %vm65, %vm71
    %vm76 = vmor %vm66, %vm72
    %vm77 = vmor %vm67, %vm73
    %v78 = vadd.s32 %v52, 128
    %v79 = vadd.s32 %v56, 128
    %vm80 = vcmp.eq.s32.totalorder %v62, %v78
    %vm81 = vcmp.eq.s32.totalorder %v63, %v78
    %vm82 = vcmp.eq.s32.totalorder %v62, %v79
    %vm83 = vcmp.eq.s32.totalorder %v63, %v79
    %vm84 = vmor %vm74, %vm80
    %vm85 = vmor %vm75, %vm81
    %vm86 = vmor %vm76, %vm82
    %vm87 = vmor %vm77, %vm83
    %v88 = vsel %vm84, 1, 0
    %v89 = vsel %vm85, 1, 0
    %v90 = vsel %vm86, 1, 0
    %v91 = vsel %vm87, 1, 0
    %v92 = vcvt.s32.f32 %v88
    %v93 = vcvt.s32.f32 %v89
    %v94 = vcvt.s32.f32 %v90
    %v95 = vcvt.s32.f32 %v91
    %v96 = vpack.c.bf16 %v94, %v92
    %v97 = vpack.c.bf16 %v95, %v93
    %v98 = vld [vmem:[#allocation2] sm:$0xff]
    %v99 = vld [vmem:[#allocation2 + $0x8] sm:$0xff]
    %v100 = vld [vmem:[#allocation6] sm:$0xf]
    %v101 = vld [vmem:[#allocation6 + $0x4] sm:$0xf]
    %v102 = vld [vmem:[#allocation6 + $0x8] sm:$0xf]
    %v103 = vld [vmem:[#allocation6 + $0xc] sm:$0xf]
    %v104 = vld [vmem:[#allocation6 + $0x10] sm:$0xf]
    %v105 = vld [vmem:[#allocation6 + $0x14] sm:$0xf]
    %v106 = vld [vmem:[#allocation6 + $0x18] sm:$0xf]
    %v107 = vld [vmem:[#allocation6 + $0x1c] sm:$0xf]
    %v108 = vld [vmem:[#allocation6 + $0x20] sm:$0xf]
    %v109 = vld [vmem:[#allocation6 + $0x24] sm:$0xf]
    %v110 = vld [vmem:[#allocation6 + $0x28] sm:$0xf]
    %v111 = vld [vmem:[#allocation6 + $0x2c] sm:$0xf]
    %v112 = vld [vmem:[#allocation6 + $0x30] sm:$0xf]
    %v113 = vld [vmem:[#allocation6 + $0x34] sm:$0xf]
    %v114 = vld [vmem:[#allocation6 + $0x38] sm:$0xf]
    %v115 = vld [vmem:[#allocation6 + $0x3c] sm:$0xf]
    %v116 = vld [vmem:[#allocation6 + $0x40] sm:$0xf]
    %v117 = vld [vmem:[#allocation6 + $0x44] sm:$0xf]
    %v118 = vld [vmem:[#allocation6 + $0x48] sm:$0xf]
    %v119 = vld [vmem:[#allocation6 + $0x4c] sm:$0xf]
    %v120 = vld [vmem:[#allocation6 + $0x50] sm:$0xf]
    %v121 = vld [vmem:[#allocation6 + $0x54] sm:$0xf]
    %v122 = vld [vmem:[#allocation6 + $0x58] sm:$0xf]
    %v123 = vld [vmem:[#allocation6 + $0x5c] sm:$0xf]
    %v148 = vunpack.c.l.b16 %v100
    %v149 = vunpack.c.l.b16 %v101
    %v150 = vunpack.c.l.b16 %v102
    %v151 = vunpack.c.l.b16 %v103
    %v152 = vunpack.c.l.b16 %v104
    %v153 = vunpack.c.l.b16 %v105
    %v154 = vunpack.c.l.b16 %v106
    %v155 = vunpack.c.l.b16 %v107
    %v156 = vunpack.c.l.b16 %v108
    %v157 = vunpack.c.l.b16 %v109
    %v158 = vunpack.c.l.b16 %v110
    %v159 = vunpack.c.l.b16 %v111
    %v160 = vunpack.c.l.b16 %v112
    %v161 = vunpack.c.l.b16 %v113
    %v162 = vunpack.c.l.b16 %v114
    %v163 = vunpack.c.l.b16 %v115
    %v164 = vunpack.c.l.b16 %v116
    %v165 = vunpack.c.l.b16 %v117
    %v166 = vunpack.c.l.b16 %v118
    %v167 = vunpack.c.l.b16 %v119
    %v168 = vunpack.c.l.b16 %v120
    %v169 = vunpack.c.l.b16 %v121
    %v170 = vunpack.c.l.b16 %v122
    %v171 = vunpack.c.l.b16 %v123
    %v172 = vpack.c.b16 %v149, %v148
    %v173 = vpack.c.b16 %v151, %v150
    %v174 = vpack.c.b16 %v153, %v152
    %v175 = vpack.c.b16 %v155, %v154
    %v176 = vpack.c.b16 %v157, %v156
    %v177 = vpack.c.b16 %v159, %v158
    %v178 = vpack.c.b16 %v161, %v160
    %v179 = vpack.c.b16 %v163, %v162
    %v180 = vpack.c.b16 %v165, %v164
    %v181 = vpack.c.b16 %v167, %v166
    %v182 = vpack.c.b16 %v169, %v168
    %v183 = vpack.c.b16 %v171, %v170
    %vm196 = vcmask 523264
    %v198 = vsel %vm196, %v97, 0
    %200 = vmatprep.subr.bf16.mxu0 0
    %201 = vmatpush1.bf16.msra.mxu0 %v172
    %202 = vmatprep.subr.bf16.mxu0 0
    %203 = vmatpush1.bf16.msra.mxu0 %v173
    %204 = vmatprep.subr.bf16.mxu0 0
    %205 = vmatpush1.bf16.msra.mxu0 %v174
    %206 = vmatprep.subr.bf16.mxu0 0
    %207 = vmatpush1.bf16.msra.mxu0 %v175
    %208 = vmatprep.subr.bf16.mxu0 0
    %209 = vmatpush1.bf16.msra.mxu0 %v176
    %210 = vmatprep.subr.bf16.mxu0 0
    %211 = vmatpush1.bf16.msra.mxu0 %v177
    %212 = vmatprep.subr.bf16.mxu0 0
    %213 = vmatpush1.bf16.msra.mxu0 %v178
    %214 = vmatprep.subr.bf16.mxu0 0
    %215 = vmatpush1.bf16.msra.mxu0 %v179
    %216 = vmatprep.subr.bf16.mxu0 0
    %217 = vmatpush1.bf16.msra.mxu0 %v180
    %218 = vmatprep.subr.bf16.mxu0 0
    %219 = vmatpush1.bf16.msra.mxu0 %v181
    %220 = vmatprep.subr.bf16.mxu0 0
    %221 = vmatpush1.bf16.msra.mxu0 %v182
    %222 = vmatprep.subr.bf16.mxu0 0
    %223 = vmatpush1.bf16.msra.mxu0 %v183
    %224 = vmatprep.subr.bf16.mxu0 0
    %225 = vmatpush1.bf16.msra.mxu0 0
    %226 = vmatprep.subr.bf16.mxu0 0
    %227 = vmatpush1.bf16.msra.mxu0 0
    %228 = vmatprep.subr.bf16.mxu0 0
    %229 = vmatpush1.bf16.msra.mxu0 0
    %230 = vmatprep.subr.bf16.mxu0 0
    %231 = vmatpush1.bf16.msra.mxu0 0
    %232 = vmatprep.mubr.bf16.mxu0 %v198
    %233 = vmatmul.mubr.bf16.gmra.mrb[0].mxu0 %v96
    %v234 = vpop.f32.mrb[0].mxu0
    %v235 = vadd.f32 0.0, %v234
    %v236 = vpop.f32.mrb[0].mxu0
    %v237 = vpop.f32.mrb[0].mxu0
    %v238 = vadd.f32 0.0, %v237
    %v239 = vpop.f32.mrb[0].mxu0
    %240 = vdwg.mxu0
    %v241 = vadd.f32 %v98, %v235
    %v242 = vadd.f32 %v99, %v238
    %243 = vst [vmem:[#allocation2] sm:$0xff] %v241
    %244 = vst [vmem:[#allocation2 + $0x8] sm:$0xff] %v242
    // Predicated region
    $region22: #{tpu_custom_call.1} parent=1 // pred_check
      %p245 = pneg %p39
    $region23: #{tpu_custom_call.1} parent=1 // pred_check_branch
      %247 = sbr.rel (%p245) target = $region25
    $region24: #{tpu_custom_call.1} parent=1 // pred_region
      %v248 = vld [vmem:[#allocation2] sm:$0xff]
      %v249 = vld [vmem:[#allocation2 + $0x8] sm:$0xff]
      %250 = vst [vmem:[#allocation8] sm:$0xff] %v248
      %251 = vst [vmem:[#allocation8 + $0x8] sm:$0xff] %v249
    $region25: #{tpu_custom_call.1} parent=1 // pred_fallthru
      _
    // Predicated region
    $region26: #{tpu_custom_call.1} parent=1 // pred_check
      _
    $region27: #{tpu_custom_call.1} parent=1 // pred_check_branch
      %253 = sbr.rel (0) target = $region29
    $region28: #{tpu_custom_call.1} parent=1 // pred_region
      %s255 = ssub.s32 256, 256
      %256 = vsyncadd [#allocation5], %s255
      %s257 = sshll.u32 [#allocation8], 4
      %s258 = int_to_ptr.vmem [resolvable:$true] %s257
      %263 = dma.vmem_to_hbm [thread:$0]  %s258, 256, %s2, [#allocation5], 128, 128, 8
    $region29: #{tpu_custom_call.1} parent=1 // pred_fallthru
      _
    // Predicated region
    $region30: #{tpu_custom_call.1} parent=1 // pred_check
      _
    $region31: #{tpu_custom_call.1} parent=1 // pred_check_branch
      %265 = sbr.rel (0) target = $region33
    $region32: #{tpu_custom_call.1} parent=1 // pred_region
      %266 = dma.done [#allocation5], 256
    $region33: #{tpu_custom_call.1} parent=1 // pred_fallthru
      _
    %267 = vsyncpa [#allocation4], 1
    %268 = vsyncpa [#allocation7], 1
    %269 = vsyncpa [#allocation5], 1

</llo_original>
